<compile_context>
chip_gen: v7x
topology: tpu7x:2x2x1
jax: 0.10.0
libtpu: 0.0.40
codegen_flags: <defaults>
</compile_context>

<pallas_src>
import functools
import math

import jax
import jax.numpy as jnp
from jax.experimental import pallas as pl
from jax.experimental.pallas import tpu as pltpu

LN_EPS = 1e-5           # nn.LayerNorm default
NEG_INF = -1e30         # additive key-padding bias (masked keys)
DIM_FEEDFORWARD = 2048  # nn.TransformerEncoderLayer default

# Tile targets. Conservative enough for v7x (64 MiB VMEM, 2 TCs) while still ~85% of
# HBM roofline per measured tiled-add data; on v5e/v6e (128 MiB) they could be doubled.
TM = 256     # rows per tile (sublane-dim granule 8)
TN = 512     # output cols per tile (lane-dim granule 128)
TK = 512     # contraction cols per tile (lane-dim granule 128)
TQ = 128     # attention query rows per tile
TKV = 128    # attention key/value rows per tile
VMEM_LIMIT = 64 * 1024 * 1024


def _pick_tile(dim, target, granule):
    """Largest divisor of `dim` that is <= target and a multiple of `granule`;
    falls back to the full dim (always legal as a full-extent block)."""
    if dim <= target:
        return dim
    t = (min(target, dim) // granule) * granule
    while t >= granule:
        if dim % t == 0:
            return t
        t -= granule
    return dim


def _compiler_params(semantics):
    return pltpu.CompilerParams(dimension_semantics=semantics,
                                vmem_limit_bytes=VMEM_LIMIT)


# ----------------------------- Pallas kernels ------------------------------

def _linear_kernel(x_ref, w_ref, b_ref, o_ref, acc_ref, *, relu):
    """o = [relu](x @ w + b); grid (M/tm, N/tn, K/tk), K-reduction last."""
    @pl.when(pl.program_id(2) == 0)
    def _():
        acc_ref[...] = jnp.zeros_like(acc_ref)

    acc_ref[...] += jnp.dot(
        x_ref[...].astype(jnp.bfloat16), w_ref[...].astype(jnp.bfloat16),
        preferred_element_type=jnp.float32)

    @pl.when(pl.program_id(2) == pl.num_programs(2) - 1)
    def _():
        y = acc_ref[...] + b_ref[...]
        if relu:
            y = jnp.maximum(y, 0.0)
        o_ref[...] = y.astype(o_ref.dtype)


def _linear_add_kernel(x_ref, w_ref, b_ref, add_ref, o_ref, acc_ref):
    """o = x @ w + b + add  (used to fuse the positional-encoding add)."""
    @pl.when(pl.program_id(2) == 0)
    def _():
        acc_ref[...] = jnp.zeros_like(acc_ref)

    acc_ref[...] += jnp.dot(
        x_ref[...].astype(jnp.bfloat16), w_ref[...].astype(jnp.bfloat16),
        preferred_element_type=jnp.float32)

    @pl.when(pl.program_id(2) == pl.num_programs(2) - 1)
    def _():
        o_ref[...] = (acc_ref[...] + b_ref[...] + add_ref[...]).astype(o_ref.dtype)


def _linear_res_ln_kernel(x_ref, w_ref, b_ref, res_ref, g_ref, beta_ref,
                          o_ref, acc_ref):
    """o = LayerNorm(x @ w + b + residual); N (=E) is NOT tiled (full LN row needed).
    Grid (M/tm, K/tk), K-reduction last."""
    @pl.when(pl.program_id(1) == 0)
    def _():
        acc_ref[...] = jnp.zeros_like(acc_ref)

    acc_ref[...] += jnp.dot(
        x_ref[...].astype(jnp.bfloat16), w_ref[...].astype(jnp.bfloat16),
        preferred_element_type=jnp.float32)

    @pl.when(pl.program_id(1) == pl.num_programs(1) - 1)
    def _():
        y = acc_ref[...] + b_ref[...] + res_ref[...]
        mean = jnp.mean(y, axis=-1, keepdims=True)
        var = jnp.mean(jnp.square(y - mean), axis=-1, keepdims=True)
        o_ref[...] = ((y - mean) * jax.lax.rsqrt(var + LN_EPS)
                      * g_ref[...] + beta_ref[...]).astype(o_ref.dtype)


def _flash_attn_kernel(qkv_q_ref, qkv_kv_ref, bias_ref, o_ref,
                       m_sc, l_sc, acc_sc, *, num_heads, head_dim, scale):
    """Flash-style MHA for one (batch, q-tile): online softmax over KV tiles.

    qkv_q_ref / qkv_kv_ref: (1, t, 3E) bf16 blocks of the packed QKV projection
    (columns [Q | K | V]); bias_ref: (1, 1, tkv) additive key-padding bias.
    Scratch is per-head-major: m/l (H, tq, 1), acc (H, tq, Dh) so the inner loop
    touches only full scratch blocks. Output o_ref: (1, tq, E) lane-dense.
    """
    ki = pl.program_id(2)
    e = num_heads * head_dim

    @pl.when(ki == 0)
    def _():
        m_sc[...] = jnp.full_like(m_sc, -jnp.inf)
        l_sc[...] = jnp.zeros_like(l_sc)
        acc_sc[...] = jnp.zeros_like(acc_sc)

    q_all = qkv_q_ref[0]      # (tq, 3E) bf16
    kv_all = qkv_kv_ref[0]    # (tkv, 3E) bf16
    bias = bias_ref[0]        # (1, tkv) f32 — broadcasts over query rows

    # TODO(synk): per-head Dh contractions underfill the 256x256 MXU on v6e/v7x;
    # batching heads into a single batched dot_general would raise MXU utilization.
    for h in range(num_heads):
        lo = h * head_dim
        q_h = q_all[:, lo:lo + head_dim]                      # (tq, Dh)
        k_h = kv_all[:, e + lo:e + lo + head_dim]             # (tkv, Dh)
        v_h = kv_all[:, 2 * e + lo:2 * e + lo + head_dim]     # (tkv, Dh)

        s = jax.lax.dot_general(q_h, k_h, (((1,), (1,)), ((), ())),
                                preferred_element_type=jnp.float32)
        s = s * scale + bias                                  # (tq, tkv)

        m_prev = m_sc[h]                                      # (tq, 1)
        m_new = jnp.maximum(m_prev, jnp.max(s, axis=-1, keepdims=True))
        alpha = jnp.exp(m_prev - m_new)
        p = jnp.exp(s - m_new)

        l_sc[h] = alpha * l_sc[h] + jnp.sum(p, axis=-1, keepdims=True)
        acc_sc[h] = (alpha * acc_sc[h]
                     + jnp.dot(p.astype(jnp.bfloat16), v_h,
                               preferred_element_type=jnp.float32))
        m_sc[h] = m_new

    @pl.when(ki == pl.num_programs(2) - 1)
    def _():
        outs = []
        for h in range(num_heads):
            inv_l = pl.reciprocal(l_sc[h], approx=True)       # (tq, 1)
            outs.append(acc_sc[h] * inv_l)
        # Single lane-dense full-block store of the merged-head output.
        o_ref[...] = jnp.concatenate(outs, axis=-1).astype(o_ref.dtype)[None]


# ------------------------------ pallas_call wrappers ------------------------

def pallas_linear(x, w, b, *, relu=False, out_dtype=jnp.float32):
    M, K = x.shape
    N = w.shape[1]
    tm = _pick_tile(M, TM, 8)
    tn = _pick_tile(N, TN, 128)
    tk = _pick_tile(K, TK, 128)
    grid = (M // tm, N // tn, K // tk)
    return pl.pallas_call(
        functools.partial(_linear_kernel, relu=relu),
        grid=grid,
        in_specs=[
            pl.BlockSpec((tm, tk), lambda i, j, k: (i, k)),
            pl.BlockSpec((tk, tn), lambda i, j, k: (k, j)),
            pl.BlockSpec((1, tn), lambda i, j, k: (0, j)),
        ],
        out_specs=pl.BlockSpec((tm, tn), lambda i, j, k: (i, j)),
        out_shape=jax.ShapeDtypeStruct((M, N), out_dtype),
        scratch_shapes=[pltpu.VMEM((tm, tn), jnp.float32)],
        compiler_params=_compiler_params(("parallel", "parallel", "arbitrary")),
    )(x, w, b.reshape(1, N))


def pallas_linear_add(x, w, b, add, *, out_dtype=jnp.float32):
    M, K = x.shape
    N = w.shape[1]
    tm = _pick_tile(M, TM, 8)
    tn = _pick_tile(N, TN, 128)
    tk = _pick_tile(K, TK, 128)
    grid = (M // tm, N // tn, K // tk)
    return pl.pallas_call(
        _linear_add_kernel,
        grid=grid,
        in_specs=[
            pl.BlockSpec((tm, tk), lambda i, j, k: (i, k)),
            pl.BlockSpec((tk, tn), lambda i, j, k: (k, j)),
            pl.BlockSpec((1, tn), lambda i, j, k: (0, j)),
            pl.BlockSpec((tm, tn), lambda i, j, k: (i, j)),
        ],
        out_specs=pl.BlockSpec((tm, tn), lambda i, j, k: (i, j)),
        out_shape=jax.ShapeDtypeStruct((M, N), out_dtype),
        scratch_shapes=[pltpu.VMEM((tm, tn), jnp.float32)],
        compiler_params=_compiler_params(("parallel", "parallel", "arbitrary")),
    )(x, w, b.reshape(1, N), add)


def pallas_linear_res_ln(x, w, b, residual, gamma, beta):
    """LayerNorm(x @ w + b + residual) — post-norm residual block, fused."""
    M, K = x.shape
    N = w.shape[1]                       # = embedding dim; not tiled (LN row)
    tm = _pick_tile(M, TM, 8)
    tk = _pick_tile(K, TK, 128)
    grid = (M // tm, K // tk)
    # TODO(synk): input_output_aliases could alias the residual buffer to the output
    # to shave an HBM allocation; kept un-aliased for safety.
    return pl.pallas_call(
        _linear_res_ln_kernel,
        grid=grid,
        in_specs=[
            pl.BlockSpec((tm, tk), lambda i, k: (i, k)),
            pl.BlockSpec((tk, N), lambda i, k: (k, 0)),
            pl.BlockSpec((1, N), lambda i, k: (0, 0)),
            pl.BlockSpec((tm, N), lambda i, k: (i, 0)),
            pl.BlockSpec((1, N), lambda i, k: (0, 0)),
            pl.BlockSpec((1, N), lambda i, k: (0, 0)),
        ],
        out_specs=pl.BlockSpec((tm, N), lambda i, k: (i, 0)),
        out_shape=jax.ShapeDtypeStruct((M, N), jnp.float32),
        scratch_shapes=[pltpu.VMEM((tm, N), jnp.float32)],
        compiler_params=_compiler_params(("parallel", "arbitrary")),
    )(x, w, b.reshape(1, N), residual, gamma.reshape(1, N), beta.reshape(1, N))


def pallas_flash_attention(qkv, key_bias, num_heads, head_dim):
    """qkv: [B, S, 3E] bf16 (packed Q|K|V); key_bias: [B, 1, S] f32 additive bias.
    Returns [B, S, E] bf16 with heads merged (lane-dense output)."""
    B, S, three_e = qkv.shape
    E = num_heads * head_dim
    tq = _pick_tile(S, TQ, 8)
    tkv = _pick_tile(S, TKV, 8)
    scale = 1.0 / math.sqrt(head_dim)
    grid = (B, S // tq, S // tkv)
    kern = functools.partial(_flash_attn_kernel, num_heads=num_heads,
                             head_dim=head_dim, scale=scale)
    return pl.pallas_call(
        kern,
        grid=grid,
        in_specs=[
            pl.BlockSpec((1, tq, three_e), lambda b, qi, ki: (b, qi, 0)),
            pl.BlockSpec((1, tkv, three_e), lambda b, qi, ki: (b, ki, 0)),
            pl.BlockSpec((1, 1, tkv), lambda b, qi, ki: (b, 0, ki)),
        ],
        out_specs=pl.BlockSpec((1, tq, E), lambda b, qi, ki: (b, qi, 0)),
        out_shape=jax.ShapeDtypeStruct((B, S, E), jnp.bfloat16),
        scratch_shapes=[pltpu.VMEM((num_heads, tq, 1), jnp.float32),         # max
                        pltpu.VMEM((num_heads, tq, 1), jnp.float32),         # sum
                        pltpu.VMEM((num_heads, tq, head_dim), jnp.float32)],  # acc
        compiler_params=_compiler_params(("parallel", "parallel", "arbitrary")),
    )(qkv, qkv, key_bias)


# ------------------------------ parameters ---------------------------------

def init_params(key, input_dim, embedding_dim, seq_length, num_heads, num_layers,
                output_dim, dim_feedforward=DIM_FEEDFORWARD):
    keys = iter(jax.random.split(key, 8 + 8 * num_layers))

    def dense(fan_in, fan_out):
        lim = 1.0 / math.sqrt(fan_in)
        w = jax.random.uniform(next(keys), (fan_in, fan_out), jnp.float32, -lim, lim)
        b = jax.random.uniform(next(keys), (fan_out,), jnp.float32, -lim, lim)
        # Weights live in bf16 (MXU-native on v5e/v6e/v7x); biases stay f32.
        return w.astype(jnp.bfloat16), b

    params = {
        'in_proj': dense(input_dim, embedding_dim),
        # nn.Parameter(torch.zeros(1, S, E)) — learnable; deterministic non-zero init.
        'pos': 0.02 * jax.random.normal(next(keys), (1, seq_length, embedding_dim),
                                        jnp.float32),
        'layers': [],
        'fc': None,
    }
    for _ in range(num_layers):
        params['layers'].append({
            'qkv': dense(embedding_dim, 3 * embedding_dim),     # in_proj_weight/bias
            'attn_out': dense(embedding_dim, embedding_dim),    # out_proj
            'ln1': (jnp.ones((embedding_dim,), jnp.float32),
                    jnp.zeros((embedding_dim,), jnp.float32)),
            'ff1': dense(embedding_dim, dim_feedforward),
            'ff2': dense(dim_feedforward, embedding_dim),
            'ln2': (jnp.ones((embedding_dim,), jnp.float32),
                    jnp.zeros((embedding_dim,), jnp.float32)),
        })
    params['fc'] = dense(embedding_dim, output_dim)
    return params


# ------------------------------ forward pass --------------------------------

def transformer_sequence_encoder(params, x, padding_mask, num_heads):
    """x: [B, S, input_dim]; padding_mask: bool [B, S] (True = padded key)."""
    x = x.astype(jnp.float32)
    B, S, Din = x.shape
    E = params['in_proj'][0].shape[1]
    H = num_heads
    Dh = E // H

    # input projection fused with positional-encoding add
    w_in, b_in = params['in_proj']
    pos = jnp.broadcast_to(params['pos'][:, :S, :], (B, S, E)).reshape(B * S, E)
    h = pallas_linear_add(x.reshape(B * S, Din), w_in, b_in, pos)      # f32 [B*S, E]

    # additive key-padding bias (True -> large negative), laid out [B, 1, S]
    key_bias = jnp.where(padding_mask, NEG_INF, 0.0).astype(jnp.float32)
    key_bias = key_bias.reshape(B, 1, S)

    for lyr in params['layers']:
        # ---- multi-head self-attention + residual + LayerNorm (post-norm) ----
        wqkv, bqkv = lyr['qkv']
        qkv = pallas_linear(h, wqkv, bqkv, out_dtype=jnp.bfloat16)     # [B*S, 3E]
        attn = pallas_flash_attention(qkv.reshape(B, S, 3 * E), key_bias, H, Dh)
        wo, bo = lyr['attn_out']
        g1, be1 = lyr['ln1']
        # out-proj + residual + LN1 fused (h stays f32)
        h = pallas_linear_res_ln(attn.reshape(B * S, E), wo, bo, h, g1, be1)

        # ---- feed-forward + residual + LayerNorm ----
        w1, bb1 = lyr['ff1']
        w2, bb2 = lyr['ff2']
        g2, be2 = lyr['ln2']
        ff = pallas_linear(h, w1, bb1, relu=True, out_dtype=jnp.bfloat16)  # [B*S, FF]
        h = pallas_linear_res_ln(ff, w2, bb2, h, g2, be2)                  # [B*S, E]

    # final classifier head
    wf, bf = params['fc']
    out = pallas_linear(h, wf, bf)                                     # [B*S, O] f32
    return out.reshape(B, S, -1)


# ------------------------------ main ----------------------------------------

if __name__ == "__main__":
    B, S = 2, 8
    input_dim, embedding_dim = 12, 32
    num_heads, num_layers, output_dim = 4, 2, 10

    root = jax.random.PRNGKey(0)
    kp, kx = jax.random.split(root)
    params = init_params(kp, input_dim, embedding_dim, S, num_heads, num_layers,
                         output_dim)

    x = jax.random.normal(kx, (B, S, input_dim), jnp.float32)
    # True = padded position (ignored as attention key); batch 1 pads last 2 tokens.
    padding_mask = jnp.zeros((B, S), dtype=bool).at[1, 6:].set(True)

    out = transformer_sequence_encoder(params, x, padding_mask, num_heads)
    out = jax.block_until_ready(out)
    assert out.shape == (B, S, output_dim)
    assert bool(jnp.all(jnp.isfinite(out)))
    print("KERNEL_OK")
</pallas_src>

<mosaic_0001>
module attributes {stable_mosaic.version = 11 : i64} {
  func.func @_linear_add_kernel(%arg0: i32, %arg1: i32, %arg2: i32, %arg3: memref<16x12xf32, #tpu.memory_space<vmem>>, %arg4: memref<12x32xbf16, #tpu.memory_space<vmem>>, %arg5: memref<1x32xf32, #tpu.memory_space<vmem>>, %arg6: memref<16x32xf32, #tpu.memory_space<vmem>>, %arg7: memref<16x32xf32, #tpu.memory_space<vmem>>, %arg8: memref<16x32xf32, #tpu.memory_space<vmem>>) attributes {dimension_semantics = [#tpu.dimension_semantics<parallel>, #tpu.dimension_semantics<parallel>, #tpu.dimension_semantics<arbitrary>], iteration_bounds = array<i64: 1, 1, 1>, scalar_prefetch = 0 : i64, scratch_operands = 1 : i64, tpu.core_type = #tpu.core_type<tc>, window_params = [{transform_indices = @transform_0, window_bounds = array<i64: 16, 12>}, {transform_indices = @transform_1, window_bounds = array<i64: 12, 32>}, {transform_indices = @transform_2, window_bounds = array<i64: 1, 32>}, {transform_indices = @transform_3, window_bounds = array<i64: 16, 32>}, {transform_indices = @transform_4, window_bounds = array<i64: 16, 32>}]} {
    %c0_i32 = arith.constant 0 : i32
    %0 = arith.cmpi eq, %arg2, %c0_i32 : i32
    %1 = arith.extui %0 : i1 to i32
    %c0_i32_0 = arith.constant 0 : i32
    %2 = arith.cmpi ne, %1, %c0_i32_0 : i32
    scf.if %2 {
      %cst_10 = arith.constant 0.000000e+00 : f32
      %13 = vector.broadcast %cst_10 : f32 to vector<16x32xf32>
      %c0_11 = arith.constant 0 : index
      %c0_12 = arith.constant 0 : index
      %14 = vector.load %arg8[%c0_11, %c0_12] : memref<16x32xf32, #tpu.memory_space<vmem>>, vector<16x32xf32>
      tpu.vector_store %arg8[%c0_11, %c0_12], %13 {strides = array<i32>} : memref<16x32xf32, #tpu.memory_space<vmem>>, vector<16x32xf32>,
    } else {
    }
    %c0 = arith.constant 0 : index
    %c0_1 = arith.constant 0 : index
    %3 = vector.load %arg8[%c0, %c0_1] : memref<16x32xf32, #tpu.memory_space<vmem>>, vector<16x32xf32>
    %c0_2 = arith.constant 0 : index
    %c0_3 = arith.constant 0 : index
    %4 = vector.load %arg3[%c0_2, %c0_3] : memref<16x12xf32, #tpu.memory_space<vmem>>, vector<16x12xf32>
    %5 = arith.truncf %4 : vector<16x12xf32> to vector<16x12xbf16>
    %c0_4 = arith.constant 0 : index
    %c0_5 = arith.constant 0 : index
    %6 = vector.load %arg4[%c0_4, %c0_5] : memref<12x32xbf16, #tpu.memory_space<vmem>>, vector<12x32xbf16>
    %cst = arith.constant dense<0.000000e+00> : vector<16x32xf32>
    %7 = tpu.matmul %5, %6, %cst {dimension_numbers = #tpu.dot_dimension_numbers<[1], [0], [0], [1], [0, 0, 1, 1], [], []>} : vector<16x12xbf16>, vector<12x32xbf16>, vector<16x32xf32> -> vector<16x32xf32>
    %8 = arith.addf %3, %7 : vector<16x32xf32>
    %c0_6 = arith.constant 0 : index
    %c0_7 = arith.constant 0 : index
    %9 = vector.load %arg8[%c0_6, %c0_7] : memref<16x32xf32, #tpu.memory_space<vmem>>, vector<16x32xf32>
    tpu.vector_store %arg8[%c0_6, %c0_7], %8 {strides = array<i32>} : memref<16x32xf32, #tpu.memory_space<vmem>>, vector<16x32xf32>,
    %c0_i32_8 = arith.constant 0 : i32
    %10 = arith.cmpi eq, %arg2, %c0_i32_8 : i32
    %11 = arith.extui %10 : i1 to i32
    %c0_i32_9 = arith.constant 0 : i32
    %12 = arith.cmpi ne, %11, %c0_i32_9 : i32
    scf.if %12 {
      %c0_10 = arith.constant 0 : index
      %c0_11 = arith.constant 0 : index
      %13 = vector.load %arg8[%c0_10, %c0_11] : memref<16x32xf32, #tpu.memory_space<vmem>>, vector<16x32xf32>
      %c0_12 = arith.constant 0 : index
      %c0_13 = arith.constant 0 : index
      %14 = vector.load %arg5[%c0_12, %c0_13] : memref<1x32xf32, #tpu.memory_space<vmem>>, vector<1x32xf32>
      %15 = vector.broadcast %14 : vector<1x32xf32> to vector<16x32xf32>
      %16 = arith.addf %13, %15 : vector<16x32xf32>
      %c0_14 = arith.constant 0 : index
      %c0_15 = arith.constant 0 : index
      %17 = vector.load %arg6[%c0_14, %c0_15] : memref<16x32xf32, #tpu.memory_space<vmem>>, vector<16x32xf32>
      %18 = arith.addf %16, %17 : vector<16x32xf32>
      %c0_16 = arith.constant 0 : index
      %c0_17 = arith.constant 0 : index
      %19 = vector.load %arg7[%c0_16, %c0_17] : memref<16x32xf32, #tpu.memory_space<vmem>>, vector<16x32xf32>
      tpu.vector_store %arg7[%c0_16, %c0_17], %18 {strides = array<i32>} : memref<16x32xf32, #tpu.memory_space<vmem>>, vector<16x32xf32>,
    } else {
    }
    return
  }
  func.func @transform_0(%arg0: i32, %arg1: i32, %arg2: i32) -> (i32, i32) {
    %c0_i32 = arith.constant 0 : i32
    return %arg0, %arg2 : i32, i32
  }
  func.func @transform_1(%arg0: i32, %arg1: i32, %arg2: i32) -> (i32, i32) {
    %c0_i32 = arith.constant 0 : i32
    return %arg2, %arg1 : i32, i32
  }
  func.func @transform_2(%arg0: i32, %arg1: i32, %arg2: i32) -> (i32, i32) {
    %c0_i32 = arith.constant 0 : i32
    %c0_i32_0 = arith.constant 0 : i32
    return %c0_i32, %arg1 : i32, i32
  }
  func.func @transform_3(%arg0: i32, %arg1: i32, %arg2: i32) -> (i32, i32) {
    %c0_i32 = arith.constant 0 : i32
    return %arg0, %arg1 : i32, i32
  }
  func.func @transform_4(%arg0: i32, %arg1: i32, %arg2: i32) -> (i32, i32) {
    %c0_i32 = arith.constant 0 : i32
    return %arg0, %arg1 : i32, i32
  }
}

</mosaic_0001>

<llo_original>
// kernel: tpu_custom_call.1
$region0: #{tpu_custom_call.1}
  #allocation0 [shape = 'u32[]', space=smem, size = 0x4, offset = 0x4, fixed_abs, tag = 'smem constant byte address 0x4 - core index']
  #allocation1 [shape = 'u32[144,128]{1,0:T(1,128)}', space=vmem, size = 0x12000, scoped, tag = 'internal scratch']
  #allocation2 [shape = 'f32[16,32]{1,0:T(8,128)}', space=vmem, size = 0x2000, scoped, tag = 'scratch operand']
  %s0 = inlined_call_operand.hbm [shape: f32[16,12], index: 0, kind: input, shape index: {}]
  %s1 = inlined_call_operand.hbm [shape: bf16[12,32], index: 1, kind: input, shape index: {}]
  %s2 = inlined_call_operand.hbm [shape: f32[1,32], index: 2, kind: input, shape index: {}]
  %s3 = inlined_call_operand.hbm [shape: f32[16,32], index: 3, kind: input, shape index: {}]
  %s4 = inlined_call_operand.hbm [shape: f32[16,32], index: 4, kind: output, shape index: {}]
  %s5 = sld [smem:[#allocation0]]
  $region50: #{tpu_custom_call.1} parent=0
    _
  %s7 = ssub.s32 1, %s5
  %s8 = scalar_select 0, %s7, %s5
  $region1: #{tpu_custom_call.1} parent=0
    #allocation3 [shape = 'u8[8192]{0}', space=vmem, size = 0x2000, scoped, tag = 'input window, operand 0, single buffered']
    #allocation4 [shape = 's32[1]{0}', space=sflag, size = 0x4, scoped, tag = 'scoped memory for tpu_custom_call.1']
    #allocation5 [shape = 's32[1]{0}', space=sflag, size = 0x4, scoped, tag = 'scoped memory for tpu_custom_call.1']
    #allocation6 [shape = 'u8[4096]{0}', space=vmem, size = 0x1000, scoped, tag = 'input window, operand 1, single buffered']
    #allocation7 [shape = 's32[1]{0}', space=sflag, size = 0x4, scoped, tag = 'scoped memory for tpu_custom_call.1']
    #allocation8 [shape = 'u8[512]{0}', space=vmem, size = 0x400, scoped, tag = 'input window, operand 2, single buffered']
    #allocation9 [shape = 'u8[8192]{0}', space=vmem, size = 0x2000, scoped, tag = 'input window, operand 3, single buffered']
    #allocation10 [shape = 's32[1]{0}', space=sflag, size = 0x4, scoped, tag = 'scoped memory for tpu_custom_call.1']
    #allocation11 [shape = 'u8[8192]{0}', space=vmem, size = 0x2000, scoped, tag = 'output window, operand 0, single buffered']
    %9 = vsyncpa [#allocation4], 0
    %10 = vsyncpa [#allocation7], 0
    %11 = vsyncpa [#allocation10], 0
    %12 = vsyncpa [#allocation5], 0
    // Predicated region
    $region2: #{tpu_custom_call.1} parent=1 // pred_check
      _
    $region3: #{tpu_custom_call.1} parent=1 // pred_check_branch
      %14 = sbr.rel (0) target = $region5
    $region4: #{tpu_custom_call.1} parent=1 // pred_region
      %s16 = ssub.s32 256, 256
      %17 = vsyncadd [#allocation4], %s16
      %s18 = sshll.u32 [#allocation3], 4
      %s19 = int_to_ptr.vmem [resolvable:$true] %s18
      %24 = dma.hbm_to_vmem [thread:$0]  %s0, 256, %s19, [#allocation4], 128, 128, 8
    $region5: #{tpu_custom_call.1} parent=1 // pred_fallthru
      _
    // Predicated region
    $region6: #{tpu_custom_call.1} parent=1 // pred_check
      _
    $region7: #{tpu_custom_call.1} parent=1 // pred_check_branch
      %26 = sbr.rel (0) target = $region9
    $region8: #{tpu_custom_call.1} parent=1 // pred_region
      %s28 = ssub.s32 128, 128
      %29 = vsyncadd [#allocation7], %s28
      %s30 = sshll.u32 [#allocation6], 4
      %s31 = int_to_ptr.vmem [resolvable:$true] %s30
      %36 = dma.hbm_to_vmem [thread:$0]  %s1, 128, %s31, [#allocation7], 64, 64, 4
    $region9: #{tpu_custom_call.1} parent=1 // pred_fallthru
      _
    // Predicated region
    $region10: #{tpu_custom_call.1} parent=1 // pred_check
      _
    $region11: #{tpu_custom_call.1} parent=1 // pred_check_branch
      %38 = sbr.rel (0) target = $region13
    $region12: #{tpu_custom_call.1} parent=1 // pred_region
      %s40 = ssub.s32 16, 16
      %41 = vsyncadd [#allocation7], %s40
      %s43 = sshll.u32 [#allocation8], 4
      %s44 = int_to_ptr.vmem [resolvable:$true] %s43
      %46 = dma.hbm_to_vmem [thread:$0]  %s2, 16, %s44, [#allocation7]
    $region13: #{tpu_custom_call.1} parent=1 // pred_fallthru
      _
    // Predicated region
    $region14: #{tpu_custom_call.1} parent=1 // pred_check
      _
    $region15: #{tpu_custom_call.1} parent=1 // pred_check_branch
      %48 = sbr.rel (0) target = $region17
    $region16: #{tpu_custom_call.1} parent=1 // pred_region
      %s50 = ssub.s32 256, 256
      %51 = vsyncadd [#allocation10], %s50
      %s52 = sshll.u32 [#allocation9], 4
      %s53 = int_to_ptr.vmem [resolvable:$true] %s52
      %58 = dma.hbm_to_vmem [thread:$0]  %s3, 256, %s53, [#allocation10], 128, 128, 8
    $region17: #{tpu_custom_call.1} parent=1 // pred_fallthru
      _
    // Predicated region
    $region18: #{tpu_custom_call.1} parent=1 // pred_check
      _
    $region19: #{tpu_custom_call.1} parent=1 // pred_check_branch
      %60 = sbr.rel (0) target = $region21
    $region20: #{tpu_custom_call.1} parent=1 // pred_region
      %61 = dma.done [#allocation4], 256
    $region21: #{tpu_custom_call.1} parent=1 // pred_fallthru
      _
    // Predicated region
    $region22: #{tpu_custom_call.1} parent=1 // pred_check
      _
    $region23: #{tpu_custom_call.1} parent=1 // pred_check_branch
      %63 = sbr.rel (0) target = $region25
    $region24: #{tpu_custom_call.1} parent=1 // pred_region
      %64 = dma.done [#allocation7], 128
    $region25: #{tpu_custom_call.1} parent=1 // pred_fallthru
      _
    // Predicated region
    $region26: #{tpu_custom_call.1} parent=1 // pred_check
      _
    $region27: #{tpu_custom_call.1} parent=1 // pred_check_branch
      %66 = sbr.rel (0) target = $region29
    $region28: #{tpu_custom_call.1} parent=1 // pred_region
      %67 = dma.done [#allocation7], 16
    $region29: #{tpu_custom_call.1} parent=1 // pred_fallthru
      _
    // Predicated region
    $region30: #{tpu_custom_call.1} parent=1 // pred_check
      _
    $region31: #{tpu_custom_call.1} parent=1 // pred_check_branch
      %69 = sbr.rel (0) target = $region33
    $region32: #{tpu_custom_call.1} parent=1 // pred_region
      %70 = dma.done [#allocation10], 256
    $region33: #{tpu_custom_call.1} parent=1 // pred_fallthru
      _
    %p72 = scmp.eq.s32.totalorder 0, 0
    // Predicated region
    $region34: #{tpu_custom_call.1} parent=1 // pred_check
      %p73 = pneg %p72
    $region35: #{tpu_custom_call.1} parent=1 // pred_check_branch
      %75 = sbr.rel (%p73) target = $region37
    $region36: #{tpu_custom_call.1} parent=1 // pred_region
      %vm76 = vcmask 261120
      %77 = vst.msk [vmem:[#allocation2] sm:$0xff] %vm76, 0.0
      %78 = vst.msk [vmem:[#allocation2 + $0x8] sm:$0xff] %vm76, 0.0
    $region37: #{tpu_custom_call.1} parent=1 // pred_fallthru
      _
    %v79 = vld [vmem:[#allocation2] sm:$0xff]
    %v80 = vld [vmem:[#allocation2 + $0x8] sm:$0xff]
    %v81 = vld [vmem:[#allocation3] sm:$0xff]
    %v82 = vld [vmem:[#allocation3 + $0x8] sm:$0xff]
    %v83 = vpack.c.bf16 %v82, %v81
    %v84 = vld [vmem:[#allocation6] sm:$0xf]
    %v85 = vld [vmem:[#allocation6 + $0x4] sm:$0x3]
    %v88 = vunpack.c.l.b16 %v84
    %v89 = vunpack.c.l.b16 %v85
    %v90 = vpack.c.b16 %v89, %v88
    %vm91 = vcmask 97280
    %v93 = vsel %vm91, %v83, 0
    %vm95 = vcmask 1045504
    %v97 = vsel %vm95, %v90, 0
    %99 = vmatprep.subr.bf16.mxu0 0
    %100 = vmatpush1.bf16.msra.mxu0 %v97
    %101 = vmatprep.subr.bf16.mxu0 0
    %102 = vmatpush1.bf16.msra.mxu0 0
    %103 = vmatprep.subr.bf16.mxu0 0
    %104 = vmatpush1.bf16.msra.mxu0 0
    %105 = vmatprep.subr.bf16.mxu0 0
    %106 = vmatpush1.bf16.msra.mxu0 0
    %107 = vmatprep.subr.bf16.mxu0 0
    %108 = vmatpush1.bf16.msra.mxu0 0
    %109 = vmatprep.subr.bf16.mxu0 0
    %110 = vmatpush1.bf16.msra.mxu0 0
    %111 = vmatprep.subr.bf16.mxu0 0
    %112 = vmatpush1.bf16.msra.mxu0 0
    %113 = vmatprep.subr.bf16.mxu0 0
    %114 = vmatpush1.bf16.msra.mxu0 0
    %115 = vmatprep.subr.bf16.mxu0 0
    %116 = vmatpush1.bf16.msra.mxu0 0
    %117 = vmatprep.subr.bf16.mxu0 0
    %118 = vmatpush1.bf16.msra.mxu0 0
    %119 = vmatprep.subr.bf16.mxu0 0
    %120 = vmatpush1.bf16.msra.mxu0 0
    %121 = vmatprep.subr.bf16.mxu0 0
    %122 = vmatpush1.bf16.msra.mxu0 0
    %123 = vmatprep.subr.bf16.mxu0 0
    %124 = vmatpush1.bf16.msra.mxu0 0
    %125 = vmatprep.subr.bf16.mxu0 0
    %126 = vmatpush1.bf16.msra.mxu0 0
    %127 = vmatprep.subr.bf16.mxu0 0
    %128 = vmatpush1.bf16.msra.mxu0 0
    %129 = vmatprep.subr.bf16.mxu0 0
    %130 = vmatpush1.bf16.msra.mxu0 0
    %131 = vmatprep.mubr.bf16.mxu0 0
    %132 = vmatmul.mubr.bf16.gmra.mrb[0].mxu0 %v93
    %v133 = vpop.f32.mrb[0].mxu0
    %v134 = vadd.f32 0.0, %v133
    %v135 = vpop.f32.mrb[0].mxu0
    %v136 = vpop.f32.mrb[0].mxu0
    %v137 = vadd.f32 0.0, %v136
    %v138 = vpop.f32.mrb[0].mxu0
    %139 = vdwg.mxu0
    %v140 = vadd.f32 %v79, %v134
    %v141 = vadd.f32 %v80, %v137
    %vm142 = vcmask 261120
    %143 = vst.msk [vmem:[#allocation2] sm:$0xff] %vm142, %v140
    %144 = vst.msk [vmem:[#allocation2 + $0x8] sm:$0xff] %vm142, %v141
    // Predicated region
    $region38: #{tpu_custom_call.1} parent=1 // pred_check
      %p145 = pneg %p72
    $region39: #{tpu_custom_call.1} parent=1 // pred_check_branch
      %147 = sbr.rel (%p145) target = $region41
    $region40: #{tpu_custom_call.1} parent=1 // pred_region
      %v148 = vld [vmem:[#allocation2] sm:$0xff]
      %v149 = vld [vmem:[#allocation2 + $0x8] sm:$0xff]
      %v150 = vld [vmem:[#allocation8] sm:$0x1]
      %v152 = vlaneseq
      %v153 = vshrl.u32 %v152, 7
      %v154 = vsub.s32 0, %v153
      %v155 = vrot.slane %v150, %v154
      %v157 = vadd.f32 %v148, %v155
      %v158 = vadd.f32 %v149, %v155
      %v159 = vld [vmem:[#allocation9] sm:$0xff]
      %v160 = vld [vmem:[#allocation9 + $0x8] sm:$0xff]
      %v161 = vadd.f32 %v157, %v159
      %v162 = vadd.f32 %v158, %v160
      %163 = vst.msk [vmem:[#allocation11] sm:$0xff] %vm142, %v161
      %164 = vst.msk [vmem:[#allocation11 + $0x8] sm:$0xff] %vm142, %v162
    $region41: #{tpu_custom_call.1} parent=1 // pred_fallthru
      _
    // Predicated region
    $region42: #{tpu_custom_call.1} parent=1 // pred_check
      _
    $region43: #{tpu_custom_call.1} parent=1 // pred_check_branch
      %166 = sbr.rel (0) target = $region45
    $region44: #{tpu_custom_call.1} parent=1 // pred_region
      %s168 = ssub.s32 256, 256
      %169 = vsyncadd [#allocation5], %s168
      %s170 = sshll.u32 [#allocation11], 4
      %s171 = int_to_ptr.vmem [resolvable:$true] %s170
      %176 = dma.vmem_to_hbm [thread:$0]  %s171, 256, %s4, [#allocation5], 128, 128, 8
    $region45: #{tpu_custom_call.1} parent=1 // pred_fallthru
      _
    // Predicated region
    $region46: #{tpu_custom_call.1} parent=1 // pred_check
      _
    $region47: #{tpu_custom_call.1} parent=1 // pred_check_branch
      %178 = sbr.rel (0) target = $region49
    $region48: #{tpu_custom_call.1} parent=1 // pred_region
      %179 = dma.done [#allocation5], 256
    $region49: #{tpu_custom_call.1} parent=1 // pred_fallthru
      _
    %180 = vsyncpa [#allocation4], 1
    %181 = vsyncpa [#allocation7], 1
    %182 = vsyncpa [#allocation10], 1
    %183 = vsyncpa [#allocation5], 1

</llo_original>
